<compile_context>
chip_gen: v5e
topology: v5e:2x2
jax: 0.10.0
libtpu: 0.0.40
codegen_flags: <defaults>
</compile_context>

<pallas_src>
import functools
import math

import jax
import jax.numpy as jnp
from jax import lax
from jax.experimental import pallas as pl
from jax.experimental.pallas import tpu as pltpu

_MIB = 1 << 20


# ----------------------------------------------------------------------------
# Small helpers
# ----------------------------------------------------------------------------
def _vmem_budget():
    """Generation-aware VMEM budget (bytes): ~3/4 of physical capacity."""
    try:
        cap = int(pltpu.get_tpu_info().vmem_capacity_bytes)
    except Exception:
        cap = 64 * _MIB  # v7x-safe fallback
    return max(min((cap * 3) // 4, cap - 8 * _MIB), 16 * _MIB)


def _pick_tile(s, target, granule=8):
    """Largest multiple-of-`granule` divisor of s that is <= target (else s)."""
    if s <= target:
        return s
    t = (min(s, target) // granule) * granule
    while t >= granule:
        if s % t == 0:
            return t
        t -= granule
    return s


def _fit_tile(s, target, granule, need_fn, budget):
    """Pick a tile <= target that keeps need_fn(tile) within the VMEM budget."""
    ts = _pick_tile(s, target, granule)
    while need_fn(ts) > budget and ts > granule:
        nxt = _pick_tile(s, max(ts // 2, granule), granule)
        if nxt >= ts:
            break
        ts = nxt
    return ts


def _granule(dtype):
    itemsize = jnp.dtype(dtype).itemsize
    return 8 * max(1, 4 // itemsize)   # 8 for f32, 16 for bf16, 32 for int8


# ----------------------------------------------------------------------------
# Kernels
# ----------------------------------------------------------------------------
def _qkv_headmajor_kernel(x_ref, w_ref, b_ref, q_ref, k_ref, v_ref, *,
                          num_heads, head_dim, out_dim):
    """One wide (C, 3D) matmul; outputs written head-major (nh, tile, dh)."""
    acc = jnp.dot(x_ref[...], w_ref[...], preferred_element_type=jnp.float32)
    acc = acc + b_ref[...]
    d = out_dim
    for h in range(num_heads):                 # one-time head split per element
        c0 = h * head_dim
        c1 = c0 + head_dim
        q_ref[h] = acc[:, c0:c1].astype(q_ref.dtype)
        k_ref[h] = acc[:, d + c0:d + c1].astype(k_ref.dtype)
        v_ref[h] = acc[:, 2 * d + c0:2 * d + c1].astype(v_ref.dtype)


def _flash_attn_kernel(q_ref, k_ref, v_ref, o_ref, m_sc, l_sc, acc_sc):
    """Flash (online-softmax) attention over head-major (tile, head_dim) blocks.

    The softmax scale is already folded into the Q projection weights, and the
    running max / sum / accumulator live in VMEM scratch across the KV axis.
    """
    ki = pl.program_id(2)

    @pl.when(ki == 0)
    def _init():
        m_sc[...] = jnp.full_like(m_sc, -jnp.inf)
        l_sc[...] = jnp.zeros_like(l_sc)
        acc_sc[...] = jnp.zeros_like(acc_sc)

    # scores: q @ k^T contracting the last dims (no K transpose/copy), native
    # dtype operands with f32 MXU accumulation.
    s = lax.dot_general(q_ref[...], k_ref[...],
                        (((1,), (1,)), ((), ())),
                        preferred_element_type=jnp.float32)

    m_prev = m_sc[...]
    m_new = jnp.maximum(m_prev, jnp.max(s, axis=-1, keepdims=True))
    alpha = jnp.exp(m_prev - m_new)
    p = jnp.exp(s - m_new)

    l_sc[...] = alpha * l_sc[...] + jnp.sum(p, axis=-1, keepdims=True)
    acc_sc[...] = alpha * acc_sc[...] + jnp.dot(
        p.astype(v_ref.dtype), v_ref[...], preferred_element_type=jnp.float32)
    m_sc[...] = m_new

    @pl.when(ki == pl.num_programs(2) - 1)
    def _finalize():
        # exact reciprocal (runs once per Q tile on a (tq, 1) array).
        inv_l = pl.reciprocal(l_sc[...], approx=False)
        o_ref[...] = (acc_sc[...] * inv_l).astype(o_ref.dtype)


def _proj_headsum_kernel(o_ref, w_ref, b_ref, y_ref, acc_ref):
    """Output projection over head-major input: y = sum_h o_h @ Wproj_h + b."""
    hi = pl.program_id(2)

    @pl.when(hi == 0)
    def _init():
        acc_ref[...] = jnp.zeros_like(acc_ref)

    acc_ref[...] += jnp.dot(o_ref[...], w_ref[...],
                            preferred_element_type=jnp.float32)

    @pl.when(hi == pl.num_programs(2) - 1)
    def _finalize():
        y_ref[...] = (acc_ref[...] + b_ref[...]).astype(y_ref.dtype)


# ----------------------------------------------------------------------------
# Pallas wrappers
# ----------------------------------------------------------------------------
def qkv_project_headmajor(x_seq, w_qkv, b_qkv, num_heads, head_dim, *,
                          tile_rows=512, budget=None):
    """x_seq (B, S, C) @ [Wq|Wk|Wv] (C, 3D) + b -> q, k, v each (B, nh, S, dh)."""
    b, s, c = x_seq.shape
    d3 = w_qkv.shape[1]
    d = d3 // 3
    itemsize = jnp.dtype(x_seq.dtype).itemsize
    budget = _vmem_budget() if budget is None else budget
    gran = _granule(x_seq.dtype)

    def need(ts_):
        io = (ts_ * c + c * d3 + d3 + 3 * ts_ * d) * itemsize
        return 2 * io + 2 * _MIB

    ts = _fit_tile(s, tile_rows, gran, need, budget)

    out_sd = jax.ShapeDtypeStruct((b, num_heads, s, head_dim), x_seq.dtype)
    out_spec = pl.BlockSpec((None, num_heads, ts, head_dim),
                            lambda bi, si: (bi, 0, si, 0))

    q, k, v = pl.pallas_call(
        functools.partial(_qkv_headmajor_kernel, num_heads=num_heads,
                          head_dim=head_dim, out_dim=d),
        grid=(b, s // ts),
        in_specs=[pl.BlockSpec((None, ts, c), lambda bi, si: (bi, si, 0)),
                  pl.BlockSpec((c, d3), lambda bi, si: (0, 0)),
                  pl.BlockSpec((1, d3), lambda bi, si: (0, 0))],
        out_specs=(out_spec, out_spec, out_spec),
        out_shape=(out_sd, out_sd, out_sd),
        compiler_params=pltpu.CompilerParams(
            dimension_semantics=("parallel", "parallel"),
            vmem_limit_bytes=int(min(max(need(ts), 4 * _MIB), budget))),
    )(x_seq, w_qkv, b_qkv.reshape(1, d3))
    return q, k, v


def sdpa_headmajor(q, k, v, *, block_q=512, block_kv=None, budget=None):
    """q: (B*nh, Sq, dh), k/v: (B*nh, Skv, dh) -> (B*nh, Sq, dh) flash attention."""
    bh, sq, dh = q.shape
    skv = k.shape[1]
    itemsize = jnp.dtype(q.dtype).itemsize
    budget = _vmem_budget() if budget is None else budget
    gran = _granule(q.dtype)

    def need(tq_, tkv_):
        io = 2 * (2 * tq_ * dh + 2 * tkv_ * dh) * itemsize   # q, o, k, v (x2 buf)
        scratch = (2 * tq_ + tq_ * dh) * 4
        return io + scratch + 2 * _MIB

    # KV tile defaults to the full KV length: with head-major blocks this is
    # small, and a constant KV block index across the Q-tile axis means K/V
    # are fetched from HBM once per (batch, head) instead of once per Q tile.
    kv_target = skv if block_kv is None else block_kv
    tq0 = _pick_tile(sq, block_q, gran)
    tkv = _fit_tile(skv, kv_target, gran, lambda t: need(tq0, t), budget)
    tq = _fit_tile(sq, block_q, gran, lambda t: need(t, tkv), budget)

    grid = (bh, sq // tq, skv // tkv)

    return pl.pallas_call(
        _flash_attn_kernel,
        grid=grid,
        in_specs=[pl.BlockSpec((None, tq, dh), lambda b, qi, ki: (b, qi, 0)),
                  pl.BlockSpec((None, tkv, dh), lambda b, qi, ki: (b, ki, 0)),
                  pl.BlockSpec((None, tkv, dh), lambda b, qi, ki: (b, ki, 0))],
        out_specs=pl.BlockSpec((None, tq, dh), lambda b, qi, ki: (b, qi, 0)),
        out_shape=jax.ShapeDtypeStruct((bh, sq, dh), q.dtype),
        scratch_shapes=[pltpu.VMEM((tq, 1), jnp.float32),
                        pltpu.VMEM((tq, 1), jnp.float32),
                        pltpu.VMEM((tq, dh), jnp.float32)],
        compiler_params=pltpu.CompilerParams(
            dimension_semantics=("parallel", "parallel", "arbitrary"),
            vmem_limit_bytes=int(min(max(need(tq, tkv), 4 * _MIB), budget))),
    )(q, k, v)


def proj_headmajor(o, w_heads, b_proj, *, tile_rows=512, budget=None):
    """o (B, nh, Sq, dh), w_heads (nh, dh, D) -> y (B, Sq, D).

    y = sum_h o[:, h] @ w_heads[h] + b  (== concat-heads @ Wproj + b), so the
    head-major attention output is consumed directly — no transpose back.
    """
    b, nh, sq, dh = o.shape
    d = w_heads.shape[-1]
    itemsize = jnp.dtype(o.dtype).itemsize
    budget = _vmem_budget() if budget is None else budget
    gran = _granule(o.dtype)

    def need(ts_):
        io = 2 * (ts_ * dh + dh * d + d + ts_ * d) * itemsize
        return io + ts_ * d * 4 + 2 * _MIB

    ts = _fit_tile(sq, tile_rows, gran, need, budget)

    return pl.pallas_call(
        _proj_headsum_kernel,
        grid=(b, sq // ts, nh),
        in_specs=[pl.BlockSpec((None, None, ts, dh),
                               lambda bi, si, hi: (bi, hi, si, 0)),
                  pl.BlockSpec((None, dh, d), lambda bi, si, hi: (hi, 0, 0)),
                  pl.BlockSpec((1, d), lambda bi, si, hi: (0, 0))],
        out_specs=pl.BlockSpec((None, ts, d), lambda bi, si, hi: (bi, si, 0)),
        out_shape=jax.ShapeDtypeStruct((b, sq, d), o.dtype),
        scratch_shapes=[pltpu.VMEM((ts, d), jnp.float32)],
        compiler_params=pltpu.CompilerParams(
            dimension_semantics=("parallel", "parallel", "arbitrary"),
            vmem_limit_bytes=int(min(max(need(ts), 4 * _MIB), budget))),
    )(o, w_heads, b_proj.reshape(1, d))


# ----------------------------------------------------------------------------
# Glue (non-Pallas)
# ----------------------------------------------------------------------------
def _max_pool_headmajor(q, H, W, stride):
    # do_pool(): MaxPool2d(kernel_size=stride, stride=stride), per head/channel.
    # TODO(synk): cheap downsample kept as lax.reduce_window glue (no Pallas kernel).
    b, nh, _, dh = q.shape
    q_img = q.reshape(b, nh, H, W, dh)
    pooled = lax.reduce_window(
        q_img, -jnp.inf, lax.max,
        window_dimensions=(1, 1, stride, stride, 1),
        window_strides=(1, 1, stride, stride, 1),
        padding="VALID")
    hq, wq = pooled.shape[2], pooled.shape[3]
    return pooled.reshape(b, nh, hq * wq, dh), hq, wq


def _max_pool_nhwc(x, stride):
    return lax.reduce_window(
        x, -jnp.inf, lax.max,
        window_dimensions=(1, stride, stride, 1),
        window_strides=(1, stride, stride, 1),
        padding="VALID")


# ----------------------------------------------------------------------------
# Full forward pass
# ----------------------------------------------------------------------------
def split_head_sam_encoder_attention(x, params, num_heads, q_pool_stride=None,
                                     *, tile_rows=512, block_q=512, block_kv=None):
    """x: (B, H, W, C) -> (B, Hq, Wq, D)  (Hq=H//s, Wq=W//s if q_pool else H, W)."""
    B, H, W, C = x.shape
    D = params["wq"].shape[1]
    dh = D // num_heads
    scale = 1.0 / math.sqrt(dh)

    # Fuse the three 1x1-conv (linear) projections into one (C, 3D) matmul and
    # fold the 1/sqrt(head_dim) softmax scale into the Q weights/bias.
    w_qkv = jnp.concatenate(
        [params["wq"] * scale, params["wk"], params["wv"]], axis=1)
    b_qkv = jnp.concatenate(
        [params["bq"] * scale, params["bk"], params["bv"]], axis=0)
    # Head-major layout of the output projection weight.
    w_proj_heads = params["wproj"].reshape(num_heads, dh, D)

    budget = _vmem_budget()

    x_seq = x.reshape(B, H * W, C)
    q, k, v = qkv_project_headmajor(x_seq, w_qkv, b_qkv, num_heads, dh,
                                    tile_rows=tile_rows, budget=budget)
    # q/k/v are (B, nh, S, dh) head-major straight from the projection kernel.

    Hq, Wq = H, W
    if q_pool_stride:
        q, Hq, Wq = _max_pool_headmajor(q, H, W, q_pool_stride)
    sq, skv = Hq * Wq, H * W

    o = sdpa_headmajor(q.reshape(B * num_heads, sq, dh),
                       k.reshape(B * num_heads, skv, dh),
                       v.reshape(B * num_heads, skv, dh),
                       block_q=block_q, block_kv=block_kv, budget=budget)

    y = proj_headmajor(o.reshape(B, num_heads, sq, dh), w_proj_heads,
                       params["bproj"], tile_rows=tile_rows, budget=budget)
    return y.reshape(B, Hq, Wq, D)


# ----------------------------------------------------------------------------
# Pure-JAX reference (for correctness check only)
# ----------------------------------------------------------------------------
def reference_forward(x, params, num_heads, q_pool_stride=None):
    B, H, W, C = x.shape
    D = params["wq"].shape[1]
    dh = D // num_heads

    def lin(t, w, b):
        return jnp.einsum("bhwc,cd->bhwd", t, w) + b

    qf = lin(x, params["wq"], params["bq"])
    kf = lin(x, params["wk"], params["bk"])
    vf = lin(x, params["wv"], params["bv"])

    def heads(t, b, hw):
        return (t.reshape(b, hw, num_heads, dh)
                 .transpose(0, 2, 1, 3).reshape(b * num_heads, hw, dh))

    k = heads(kf.reshape(B, H * W, D), B, H * W)
    v = heads(vf.reshape(B, H * W, D), B, H * W)
    Hq, Wq = H, W
    if q_pool_stride:
        qp = _max_pool_nhwc(qf, q_pool_stride)
        Hq, Wq = qp.shape[1], qp.shape[2]
        q = heads(qp.reshape(B, Hq * Wq, D), B, Hq * Wq)
    else:
        q = heads(qf.reshape(B, H * W, D), B, H * W)

    s = jnp.einsum("bqd,bkd->bqk", q, k) / math.sqrt(dh)
    p = jax.nn.softmax(s, axis=-1)
    o = jnp.einsum("bqk,bkd->bqd", p, v)
    o = (o.reshape(B, num_heads, Hq * Wq, dh)
          .transpose(0, 2, 1, 3).reshape(B, Hq, Wq, D))
    return jnp.einsum("bhwc,cd->bhwd", o, params["wproj"]) + params["bproj"]


# ----------------------------------------------------------------------------
# Demo
# ----------------------------------------------------------------------------
if __name__ == "__main__":
    key = jax.random.PRNGKey(0)
    B, H, W = 2, 8, 8
    dim = 32            # in_feature == out_feature == dim (qkv weight: (3*dim, dim))
    num_heads = 4       # head_dim = 8

    ks = jax.random.split(key, 9)
    params = {
        "wq": jax.random.normal(ks[0], (dim, dim), jnp.float32) * 0.02,
        "wk": jax.random.normal(ks[1], (dim, dim), jnp.float32) * 0.02,
        "wv": jax.random.normal(ks[2], (dim, dim), jnp.float32) * 0.02,
        "bq": jax.random.normal(ks[3], (dim,), jnp.float32) * 0.02,
        "bk": jax.random.normal(ks[4], (dim,), jnp.float32) * 0.02,
        "bv": jax.random.normal(ks[5], (dim,), jnp.float32) * 0.02,
        "wproj": jax.random.normal(ks[6], (dim, dim), jnp.float32) * 0.02,
        "bproj": jax.random.normal(ks[7], (dim,), jnp.float32) * 0.02,
    }
    x = jax.random.normal(ks[8], (B, H, W, dim), jnp.float32)

    ok = True
    cases = (
        # small tiles so the demo exercises multi-step row / q / kv pipelining
        (None, dict(tile_rows=32, block_q=32, block_kv=32)),
        (2,    dict(tile_rows=32, block_q=32, block_kv=32)),
        # default tiles: resident-KV path (single KV block per batch*head)
        (None, dict()),
    )
    for q_pool_stride, kwargs in cases:
        out = split_head_sam_encoder_attention(
            x, params, num_heads, q_pool_stride, **kwargs)
        out = jax.block_until_ready(out)
        ref = reference_forward(x, params, num_heads, q_pool_stride)
        # softmax normalization is exact now; tolerance only covers f32 MXU
        # accumulation-order / matmul-pass differences vs. the XLA reference.
        if not jnp.allclose(out, ref, rtol=1e-2, atol=1e-4):
            ok = False
            print("MISMATCH q_pool_stride =", q_pool_stride, "kwargs =", kwargs,
                  "max err:", float(jnp.max(jnp.abs(out - ref))))

    if ok:
        print("KERNEL_OK")
</pallas_src>

<mosaic_0001>
module attributes {stable_mosaic.version = 11 : i64} {
  func.func @_qkv_headmajor_kernel(%arg0: i32, %arg1: i32, %arg2: memref<1x32x32xf32, #tpu.memory_space<vmem>>, %arg3: memref<32x96xf32, #tpu.memory_space<vmem>>, %arg4: memref<1x96xf32, #tpu.memory_space<vmem>>, %arg5: memref<1x4x32x8xf32, #tpu.memory_space<vmem>>, %arg6: memref<1x4x32x8xf32, #tpu.memory_space<vmem>>, %arg7: memref<1x4x32x8xf32, #tpu.memory_space<vmem>>) attributes {dimension_semantics = [#tpu.dimension_semantics<parallel>, #tpu.dimension_semantics<parallel>], iteration_bounds = array<i64: 2, 2>, scalar_prefetch = 0 : i64, scratch_operands = 0 : i64, tpu.core_type = #tpu.core_type<tc>, window_params = [{transform_indices = @transform_0, window_bounds = array<i64: 1, 32, 32>}, {pipeline_mode = #tpu.pipeline_mode<synchronous>, transform_indices = @transform_1, window_bounds = array<i64: 32, 96>}, {pipeline_mode = #tpu.pipeline_mode<synchronous>, transform_indices = @transform_2, window_bounds = array<i64: 1, 96>}, {transform_indices = @transform_3, window_bounds = array<i64: 1, 4, 32, 8>}, {transform_indices = @transform_4, window_bounds = array<i64: 1, 4, 32, 8>}, {transform_indices = @transform_5, window_bounds = array<i64: 1, 4, 32, 8>}]} {
    %c0 = arith.constant 0 : index
    %c0_0 = arith.constant 0 : index
    %c0_1 = arith.constant 0 : index
    %0 = vector.load %arg2[%c0, %c0_0, %c0_1] : memref<1x32x32xf32, #tpu.memory_space<vmem>>, vector<1x32x32xf32>
    %1 = vector.shape_cast %0 : vector<1x32x32xf32> to vector<32x32xf32>
    %c0_2 = arith.constant 0 : index
    %c0_3 = arith.constant 0 : index
    %2 = vector.load %arg3[%c0_2, %c0_3] : memref<32x96xf32, #tpu.memory_space<vmem>>, vector<32x96xf32>
    %cst = arith.constant dense<0.000000e+00> : vector<32x96xf32>
    %3 = tpu.matmul %1, %2, %cst {dimension_numbers = #tpu.dot_dimension_numbers<[1], [0], [0], [1], [0, 0, 1, 1], [], []>} : vector<32x32xf32>, vector<32x96xf32>, vector<32x96xf32> -> vector<32x96xf32>
    %c0_4 = arith.constant 0 : index
    %c0_5 = arith.constant 0 : index
    %4 = vector.load %arg4[%c0_4, %c0_5] : memref<1x96xf32, #tpu.memory_space<vmem>>, vector<1x96xf32>
    %5 = vector.broadcast %4 : vector<1x96xf32> to vector<32x96xf32>
    %6 = arith.addf %3, %5 : vector<32x96xf32>
    %7 = vector.extract_strided_slice %6 {offsets = [0, 0], sizes = [32, 8], strides = [1, 1]} : vector<32x96xf32> to vector<32x8xf32>
    %c0_6 = arith.constant 0 : index
    %c0_7 = arith.constant 0 : index
    %c0_8 = arith.constant 0 : index
    %c0_9 = arith.constant 0 : index
    %8 = vector.load %arg5[%c0_6, %c0_7, %c0_8, %c0_9] : memref<1x4x32x8xf32, #tpu.memory_space<vmem>>, vector<1x1x32x8xf32>
    %9 = vector.shape_cast %8 : vector<1x1x32x8xf32> to vector<32x8xf32>
    %10 = vector.shape_cast %7 : vector<32x8xf32> to vector<1x1x32x8xf32>
    tpu.vector_store %arg5[%c0_6, %c0_7, %c0_8, %c0_9], %10 {strides = array<i32>} : memref<1x4x32x8xf32, #tpu.memory_space<vmem>>, vector<1x1x32x8xf32>,
    %11 = vector.extract_strided_slice %6 {offsets = [0, 32], sizes = [32, 8], strides = [1, 1]} : vector<32x96xf32> to vector<32x8xf32>
    %c0_10 = arith.constant 0 : index
    %c0_11 = arith.constant 0 : index
    %c0_12 = arith.constant 0 : index
    %c0_13 = arith.constant 0 : index
    %12 = vector.load %arg6[%c0_10, %c0_11, %c0_12, %c0_13] : memref<1x4x32x8xf32, #tpu.memory_space<vmem>>, vector<1x1x32x8xf32>
    %13 = vector.shape_cast %12 : vector<1x1x32x8xf32> to vector<32x8xf32>
    %14 = vector.shape_cast %11 : vector<32x8xf32> to vector<1x1x32x8xf32>
    tpu.vector_store %arg6[%c0_10, %c0_11, %c0_12, %c0_13], %14 {strides = array<i32>} : memref<1x4x32x8xf32, #tpu.memory_space<vmem>>, vector<1x1x32x8xf32>,
    %15 = vector.extract_strided_slice %6 {offsets = [0, 64], sizes = [32, 8], strides = [1, 1]} : vector<32x96xf32> to vector<32x8xf32>
    %c0_14 = arith.constant 0 : index
    %c0_15 = arith.constant 0 : index
    %c0_16 = arith.constant 0 : index
    %c0_17 = arith.constant 0 : index
    %16 = vector.load %arg7[%c0_14, %c0_15, %c0_16, %c0_17] : memref<1x4x32x8xf32, #tpu.memory_space<vmem>>, vector<1x1x32x8xf32>
    %17 = vector.shape_cast %16 : vector<1x1x32x8xf32> to vector<32x8xf32>
    %18 = vector.shape_cast %15 : vector<32x8xf32> to vector<1x1x32x8xf32>
    tpu.vector_store %arg7[%c0_14, %c0_15, %c0_16, %c0_17], %18 {strides = array<i32>} : memref<1x4x32x8xf32, #tpu.memory_space<vmem>>, vector<1x1x32x8xf32>,
    %19 = vector.extract_strided_slice %6 {offsets = [0, 8], sizes = [32, 8], strides = [1, 1]} : vector<32x96xf32> to vector<32x8xf32>
    %c0_18 = arith.constant 0 : index
    %c1 = arith.constant 1 : index
    %c0_19 = arith.constant 0 : index
    %c0_20 = arith.constant 0 : index
    %20 = vector.load %arg5[%c0_18, %c1, %c0_19, %c0_20] : memref<1x4x32x8xf32, #tpu.memory_space<vmem>>, vector<1x1x32x8xf32>
    %21 = vector.shape_cast %20 : vector<1x1x32x8xf32> to vector<32x8xf32>
    %22 = vector.shape_cast %19 : vector<32x8xf32> to vector<1x1x32x8xf32>
    tpu.vector_store %arg5[%c0_18, %c1, %c0_19, %c0_20], %22 {strides = array<i32>} : memref<1x4x32x8xf32, #tpu.memory_space<vmem>>, vector<1x1x32x8xf32>,
    %23 = vector.extract_strided_slice %6 {offsets = [0, 40], sizes = [32, 8], strides = [1, 1]} : vector<32x96xf32> to vector<32x8xf32>
    %c0_21 = arith.constant 0 : index
    %c1_22 = arith.constant 1 : index
    %c0_23 = arith.constant 0 : index
    %c0_24 = arith.constant 0 : index
    %24 = vector.load %arg6[%c0_21, %c1_22, %c0_23, %c0_24] : memref<1x4x32x8xf32, #tpu.memory_space<vmem>>, vector<1x1x32x8xf32>
    %25 = vector.shape_cast %24 : vector<1x1x32x8xf32> to vector<32x8xf32>
    %26 = vector.shape_cast %23 : vector<32x8xf32> to vector<1x1x32x8xf32>
    tpu.vector_store %arg6[%c0_21, %c1_22, %c0_23, %c0_24], %26 {strides = array<i32>} : memref<1x4x32x8xf32, #tpu.memory_space<vmem>>, vector<1x1x32x8xf32>,
    %27 = vector.extract_strided_slice %6 {offsets = [0, 72], sizes = [32, 8], strides = [1, 1]} : vector<32x96xf32> to vector<32x8xf32>
    %c0_25 = arith.constant 0 : index
    %c1_26 = arith.constant 1 : index
    %c0_27 = arith.constant 0 : index
    %c0_28 = arith.constant 0 : index
    %28 = vector.load %arg7[%c0_25, %c1_26, %c0_27, %c0_28] : memref<1x4x32x8xf32, #tpu.memory_space<vmem>>, vector<1x1x32x8xf32>
    %29 = vector.shape_cast %28 : vector<1x1x32x8xf32> to vector<32x8xf32>
    %30 = vector.shape_cast %27 : vector<32x8xf32> to vector<1x1x32x8xf32>
    tpu.vector_store %arg7[%c0_25, %c1_26, %c0_27, %c0_28], %30 {strides = array<i32>} : memref<1x4x32x8xf32, #tpu.memory_space<vmem>>, vector<1x1x32x8xf32>,
    %31 = vector.extract_strided_slice %6 {offsets = [0, 16], sizes = [32, 8], strides = [1, 1]} : vector<32x96xf32> to vector<32x8xf32>
    %c0_29 = arith.constant 0 : index
    %c2 = arith.constant 2 : index
    %c0_30 = arith.constant 0 : index
    %c0_31 = arith.constant 0 : index
    %32 = vector.load %arg5[%c0_29, %c2, %c0_30, %c0_31] : memref<1x4x32x8xf32, #tpu.memory_space<vmem>>, vector<1x1x32x8xf32>
    %33 = vector.shape_cast %32 : vector<1x1x32x8xf32> to vector<32x8xf32>
    %34 = vector.shape_cast %31 : vector<32x8xf32> to vector<1x1x32x8xf32>
    tpu.vector_store %arg5[%c0_29, %c2, %c0_30, %c0_31], %34 {strides = array<i32>} : memref<1x4x32x8xf32, #tpu.memory_space<vmem>>, vector<1x1x32x8xf32>,
    %35 = vector.extract_strided_slice %6 {offsets = [0, 48], sizes = [32, 8], strides = [1, 1]} : vector<32x96xf32> to vector<32x8xf32>
    %c0_32 = arith.constant 0 : index
    %c2_33 = arith.constant 2 : index
    %c0_34 = arith.constant 0 : index
    %c0_35 = arith.constant 0 : index
    %36 = vector.load %arg6[%c0_32, %c2_33, %c0_34, %c0_35] : memref<1x4x32x8xf32, #tpu.memory_space<vmem>>, vector<1x1x32x8xf32>
    %37 = vector.shape_cast %36 : vector<1x1x32x8xf32> to vector<32x8xf32>
    %38 = vector.shape_cast %35 : vector<32x8xf32> to vector<1x1x32x8xf32>
    tpu.vector_store %arg6[%c0_32, %c2_33, %c0_34, %c0_35], %38 {strides = array<i32>} : memref<1x4x32x8xf32, #tpu.memory_space<vmem>>, vector<1x1x32x8xf32>,
    %39 = vector.extract_strided_slice %6 {offsets = [0, 80], sizes = [32, 8], strides = [1, 1]} : vector<32x96xf32> to vector<32x8xf32>
    %c0_36 = arith.constant 0 : index
    %c2_37 = arith.constant 2 : index
    %c0_38 = arith.constant 0 : index
    %c0_39 = arith.constant 0 : index
    %40 = vector.load %arg7[%c0_36, %c2_37, %c0_38, %c0_39] : memref<1x4x32x8xf32, #tpu.memory_space<vmem>>, vector<1x1x32x8xf32>
    %41 = vector.shape_cast %40 : vector<1x1x32x8xf32> to vector<32x8xf32>
    %42 = vector.shape_cast %39 : vector<32x8xf32> to vector<1x1x32x8xf32>
    tpu.vector_store %arg7[%c0_36, %c2_37, %c0_38, %c0_39], %42 {strides = array<i32>} : memref<1x4x32x8xf32, #tpu.memory_space<vmem>>, vector<1x1x32x8xf32>,
    %43 = vector.extract_strided_slice %6 {offsets = [0, 24], sizes = [32, 8], strides = [1, 1]} : vector<32x96xf32> to vector<32x8xf32>
    %c0_40 = arith.constant 0 : index
    %c3 = arith.constant 3 : index
    %c0_41 = arith.constant 0 : index
    %c0_42 = arith.constant 0 : index
    %44 = vector.load %arg5[%c0_40, %c3, %c0_41, %c0_42] : memref<1x4x32x8xf32, #tpu.memory_space<vmem>>, vector<1x1x32x8xf32>
    %45 = vector.shape_cast %44 : vector<1x1x32x8xf32> to vector<32x8xf32>
    %46 = vector.shape_cast %43 : vector<32x8xf32> to vector<1x1x32x8xf32>
    tpu.vector_store %arg5[%c0_40, %c3, %c0_41, %c0_42], %46 {strides = array<i32>} : memref<1x4x32x8xf32, #tpu.memory_space<vmem>>, vector<1x1x32x8xf32>,
    %47 = vector.extract_strided_slice %6 {offsets = [0, 56], sizes = [32, 8], strides = [1, 1]} : vector<32x96xf32> to vector<32x8xf32>
    %c0_43 = arith.constant 0 : index
    %c3_44 = arith.constant 3 : index
    %c0_45 = arith.constant 0 : index
    %c0_46 = arith.constant 0 : index
    %48 = vector.load %arg6[%c0_43, %c3_44, %c0_45, %c0_46] : memref<1x4x32x8xf32, #tpu.memory_space<vmem>>, vector<1x1x32x8xf32>
    %49 = vector.shape_cast %48 : vector<1x1x32x8xf32> to vector<32x8xf32>
    %50 = vector.shape_cast %47 : vector<32x8xf32> to vector<1x1x32x8xf32>
    tpu.vector_store %arg6[%c0_43, %c3_44, %c0_45, %c0_46], %50 {strides = array<i32>} : memref<1x4x32x8xf32, #tpu.memory_space<vmem>>, vector<1x1x32x8xf32>,
    %51 = vector.extract_strided_slice %6 {offsets = [0, 88], sizes = [32, 8], strides = [1, 1]} : vector<32x96xf32> to vector<32x8xf32>
    %c0_47 = arith.constant 0 : index
    %c3_48 = arith.constant 3 : index
    %c0_49 = arith.constant 0 : index
    %c0_50 = arith.constant 0 : index
    %52 = vector.load %arg7[%c0_47, %c3_48, %c0_49, %c0_50] : memref<1x4x32x8xf32, #tpu.memory_space<vmem>>, vector<1x1x32x8xf32>
    %53 = vector.shape_cast %52 : vector<1x1x32x8xf32> to vector<32x8xf32>
    %54 = vector.shape_cast %51 : vector<32x8xf32> to vector<1x1x32x8xf32>
    tpu.vector_store %arg7[%c0_47, %c3_48, %c0_49, %c0_50], %54 {strides = array<i32>} : memref<1x4x32x8xf32, #tpu.memory_space<vmem>>, vector<1x1x32x8xf32>,
    return
  }
  func.func @transform_0(%arg0: i32, %arg1: i32) -> (i32, i32, i32) {
    %c0_i32 = arith.constant 0 : i32
    %c0_i32_0 = arith.constant 0 : i32
    return %arg0, %arg1, %c0_i32 : i32, i32, i32
  }
  func.func @transform_1(%arg0: i32, %arg1: i32) -> (i32, i32) {
    %c0_i32 = arith.constant 0 : i32
    %c0_i32_0 = arith.constant 0 : i32
    %c0_i32_1 = arith.constant 0 : i32
    return %c0_i32, %c0_i32_0 : i32, i32
  }
  func.func @transform_2(%arg0: i32, %arg1: i32) -> (i32, i32) {
    %c0_i32 = arith.constant 0 : i32
    %c0_i32_0 = arith.constant 0 : i32
    %c0_i32_1 = arith.constant 0 : i32
    return %c0_i32, %c0_i32_0 : i32, i32
  }
  func.func @transform_3(%arg0: i32, %arg1: i32) -> (i32, i32, i32, i32) {
    %c0_i32 = arith.constant 0 : i32
    %c0_i32_0 = arith.constant 0 : i32
    %c0_i32_1 = arith.constant 0 : i32
    return %arg0, %c0_i32, %arg1, %c0_i32_0 : i32, i32, i32, i32
  }
  func.func @transform_4(%arg0: i32, %arg1: i32) -> (i32, i32, i32, i32) {
    %c0_i32 = arith.constant 0 : i32
    %c0_i32_0 = arith.constant 0 : i32
    %c0_i32_1 = arith.constant 0 : i32
    return %arg0, %c0_i32, %arg1, %c0_i32_0 : i32, i32, i32, i32
  }
  func.func @transform_5(%arg0: i32, %arg1: i32) -> (i32, i32, i32, i32) {
    %c0_i32 = arith.constant 0 : i32
    %c0_i32_0 = arith.constant 0 : i32
    %c0_i32_1 = arith.constant 0 : i32
    return %arg0, %c0_i32, %arg1, %c0_i32_0 : i32, i32, i32, i32
  }
}

</mosaic_0001>

<llo_original>
// kernel: tpu_custom_call.1
$region0: #{tpu_custom_call.1}
  #allocation0 [shape = 'u32[]', space=smem, size = 0x4, offset = 0x4, fixed_abs, tag = 'smem constant byte address 0x4 - core index']
  #allocation1 [shape = 'u32[72,128]{1,0:T(1,128)}', space=vmem, size = 0x9000, scoped, tag = 'internal scratch']
  %s0 = inlined_call_operand.vmem [shape: f32[2,64,32], index: 0, kind: input, shape index: {}]
  %s1 = inlined_call_operand.vmem [shape: f32[32,96], index: 1, kind: input, shape index: {}]
  %s2 = inlined_call_operand.vmem [shape: f32[1,96], index: 2, kind: input, shape index: {}]
  %s3 = inlined_call_operand.vmem [shape: f32[2,4,64,8], index: 3, kind: output, shape index: {0}]
  %s4 = inlined_call_operand.vmem [shape: f32[2,4,64,8], index: 4, kind: output, shape index: {1}]
  %s5 = inlined_call_operand.vmem [shape: f32[2,4,64,8], index: 5, kind: output, shape index: {2}]
  %6 = xla_tuple %s3, %s4, %s5
  %s7 = sld [smem:[#allocation0]]
  $region163: #{tpu_custom_call.1} parent=0
    _
  %s9 = ssub.s32 1, %s7
  %s10 = scalar_select 0, %s9, %s7
  $region1: #{tpu_custom_call.1} parent=0
    #allocation2 [shape = 'u8[131072]{0}', space=vmem, size = 0x20000, scoped, tag = 'output window, operand 0']
    #allocation3 [shape = 'u8[131072]{0}', space=vmem, size = 0x20000, scoped, tag = 'output window, operand 1']
    #allocation4 [shape = 'u8[131072]{0}', space=vmem, size = 0x20000, scoped, tag = 'output window, operand 2']
    loop: start=0, step=1, limit=6
    $region2: #{tpu_custom_call.1} parent=1 // loop_pre_header
      _
    $region3: #{tpu_custom_call.1} parent=1 // loop_header
      %s12 = sphi 0, %s16
      %p13 = scmp.ge.s32.totalorder %s12, 6
      %s19 = sphi 0, %s31
      %s20 = sphi 0, %s27
      %s21 = sphi 0, %s19
      %s22 = sphi 0, %s20
      %s23 = sphi 0, %s21
      %s24 = sphi 0, %s22
      %s36 = sphi 0, %s38
      %s39 = sphi 0, %s36
      %s40 = sphi 0, %s39
      %s56 = sphi 0, %s40
      %s60 = sphi 0, %s60
      %s62 = sphi 0, %s60
      %s63 = sphi 0, %s62
      %s77 = sphi 0, %s63
      %s81 = sphi 0, %s81
      %s83 = sphi 0, %s81
      %s84 = sphi 0, %s83
      %s98 = sphi 0, %s84
      %s106 = sphi 0, %s108
      %s109 = sphi 0, %s106
      %s110 = sphi 0, %s109
      %s126 = sphi 0, %s110
      %s134 = sphi 0, %s136
      %s137 = sphi 0, %s134
      %s138 = sphi 0, %s137
      %s154 = sphi 0, %s138
      %s162 = sphi 0, %s164
      %s165 = sphi 0, %s162
      %s166 = sphi 0, %s165
      %s182 = sphi 0, %s166
    $region4: #{tpu_custom_call.1} parent=1 // loop_header_branch
      %15 = sbr.rel (%p13) target = $region8
    $region5: #{tpu_custom_call.1} parent=1 // loop_body
      %s17 = ssub.s32 %s12, 1
      %s18 = ssub.s32 %s12, 2
      %s25 = sadd.s32 1, %s20
      %p26 = scmp.ge.s32.totalorder %s25, 2
      %s27 = scalar_select %p26, 0, %s25
      %s28 = sadd.s32 1, %s19
      %s29 = scalar_select %p26, %s28, %s19
      %p30 = scmp.ge.s32.totalorder %s29, 2
      %s31 = scalar_select %p30, 0, %s29
      %s32 = ssub.s32 %s19, %s31
      %s33 = ssub.s32 %s20, %s27
      %s34 = sor.u32 %s32, %s33
      %p35 = scmp.eq.s32.totalorder %s34, 0
      %s37 = sadd.s32 %s36, 1
      %s38 = scalar_select %p35, %s36, %s37
      %p41 = pneg %p35
      %p42 = scmp.eq.s32.totalorder %s12, 3
      %p43 = por %p41, %p42
      %p44 = scmp.ne.s32.totalorder %s36, %s39
      %p45 = scmp.eq.s32.totalorder %s12, 0
      %p46 = por %p44, %p45
      %p47 = scmp.ne.s32.totalorder %s36, %s39
      %p48 = scmp.eq.s32.totalorder %s17, 3
      %p49 = por %p47, %p48
      %p50 = scmp.ne.s32.totalorder %s39, %s40
      %p51 = scmp.eq.s32.totalorder %s17, 0
      %p52 = por %p50, %p51
      %p53 = scmp.ne.s32.totalorder %s39, %s40
      %p54 = scmp.eq.s32.totalorder %s18, 3
      %p55 = por %p53, %p54
      %p57 = scmp.ne.s32.totalorder %s40, %s56
      %p58 = scmp.eq.s32.totalorder %s18, 0
      %p59 = por %p57, %p58
      %s61 = sadd.s32 %s60, 1
      %p64 = scmp.eq.s32.totalorder %s12, 3
      %p65 = scmp.ne.s32.totalorder %s60, %s62
      %p66 = scmp.eq.s32.totalorder %s12, 0
      %p67 = por %p65, %p66
      %p68 = scmp.ne.s32.totalorder %s60, %s62
      %p69 = scmp.eq.s32.totalorder %s17, 3
      %p70 = por %p68, %p69
      %p71 = scmp.ne.s32.totalorder %s62, %s63
      %p72 = scmp.eq.s32.totalorder %s17, 0
      %p73 = por %p71, %p72
      %p74 = scmp.ne.s32.totalorder %s62, %s63
      %p75 = scmp.eq.s32.totalorder %s18, 3
      %p76 = por %p74, %p75
      %p78 = scmp.ne.s32.totalorder %s63, %s77
      %p79 = scmp.eq.s32.totalorder %s18, 0
      %p80 = por %p78, %p79
      %s82 = sadd.s32 %s81, 1
      %p85 = scmp.eq.s32.totalorder %s12, 3
      %p86 = scmp.ne.s32.totalorder %s81, %s83
      %p87 = scmp.eq.s32.totalorder %s12, 0
      %p88 = por %p86, %p87
      %p89 = scmp.ne.s32.totalorder %s81, %s83
      %p90 = scmp.eq.s32.totalorder %s17, 3
      %p91 = por %p89, %p90
      %p92 = scmp.ne.s32.totalorder %s83, %s84
      %p93 = scmp.eq.s32.totalorder %s17, 0
      %p94 = por %p92, %p93
      %p95 = scmp.ne.s32.totalorder %s83, %s84
      %p96 = scmp.eq.s32.totalorder %s18, 3
      %p97 = por %p95, %p96
      %p99 = scmp.ne.s32.totalorder %s84, %s98
      %p100 = scmp.eq.s32.totalorder %s18, 0
      %p101 = por %p99, %p100
      %s102 = ssub.s32 %s19, %s31
      %s103 = ssub.s32 %s20, %s27
      %s104 = sor.u32 %s102, %s103
      %p105 = scmp.eq.s32.totalorder %s104, 0
      %s107 = sadd.s32 %s106, 1
      %s108 = scalar_select %p105, %s106, %s107
      %p111 = pneg %p105
      %p112 = scmp.eq.s32.totalorder %s12, 3
      %p113 = por %p111, %p112
      %p114 = scmp.ne.s32.totalorder %s106, %s109
      %p115 = scmp.eq.s32.totalorder %s12, 0
      %p116 = por %p114, %p115
      %p117 = scmp.ne.s32.totalorder %s106, %s109
      %p118 = scmp.eq.s32.totalorder %s17, 3
      %p119 = por %p117, %p118
      %p120 = scmp.ne.s32.totalorder %s109, %s110
      %p121 = scmp.eq.s32.totalorder %s17, 0
      %p122 = por %p120, %p121
      %p123 = scmp.ne.s32.totalorder %s109, %s110
      %p124 = scmp.eq.s32.totalorder %s18, 3
      %p125 = por %p123, %p124
      %p127 = scmp.ne.s32.totalorder %s110, %s126
      %p128 = scmp.eq.s32.totalorder %s18, 0
      %p129 = por %p127, %p128
      %s130 = ssub.s32 %s19, %s31
      %s131 = ssub.s32 %s20, %s27
      %s132 = sor.u32 %s130, %s131
      %p133 = scmp.eq.s32.totalorder %s132, 0
      %s135 = sadd.s32 %s134, 1
      %s136 = scalar_select %p133, %s134, %s135
      %p139 = pneg %p133
      %p140 = scmp.eq.s32.totalorder %s12, 3
      %p141 = por %p139, %p140
      %p142 = scmp.ne.s32.totalorder %s134, %s137
      %p143 = scmp.eq.s32.totalorder %s12, 0
      %p144 = por %p142, %p143
      %p145 = scmp.ne.s32.totalorder %s134, %s137
      %p146 = scmp.eq.s32.totalorder %s17, 3
      %p147 = por %p145, %p146
      %p148 = scmp.ne.s32.totalorder %s137, %s138
      %p149 = scmp.eq.s32.totalorder %s17, 0
      %p150 = por %p148, %p149
      %p151 = scmp.ne.s32.totalorder %s137, %s138
      %p152 = scmp.eq.s32.totalorder %s18, 3
      %p153 = por %p151, %p152
      %p155 = scmp.ne.s32.totalorder %s138, %s154
      %p156 = scmp.eq.s32.totalorder %s18, 0
      %p157 = por %p155, %p156
      %s158 = ssub.s32 %s19, %s31
      %s159 = ssub.s32 %s20, %s27
      %s160 = sor.u32 %s158, %s159
      %p161 = scmp.eq.s32.totalorder %s160, 0
      %s163 = sadd.s32 %s162, 1
      %s164 = scalar_select %p161, %s162, %s163
      %p167 = pneg %p161
      %p168 = scmp.eq.s32.totalorder %s12, 3
      %p169 = por %p167, %p168
      %p170 = scmp.ne.s32.totalorder %s162, %s165
      %p171 = scmp.eq.s32.totalorder %s12, 0
      %p172 = por %p170, %p171
      %p173 = scmp.ne.s32.totalorder %s162, %s165
      %p174 = scmp.eq.s32.totalorder %s17, 3
      %p175 = por %p173, %p174
      %p176 = scmp.ne.s32.totalorder %s165, %s166
      %p177 = scmp.eq.s32.totalorder %s17, 0
      %p178 = por %p176, %p177
      %p179 = scmp.ne.s32.totalorder %s165, %s166
      %p180 = scmp.eq.s32.totalorder %s18, 3
      %p181 = por %p179, %p180
      %p183 = scmp.ne.s32.totalorder %s166, %s182
      %p184 = scmp.eq.s32.totalorder %s18, 0
      %p185 = por %p183, %p184
      %p186 = scmp.le.s32.totalorder 1, %s12
      %p187 = scmp.lt.s32.totalorder %s12, 5
      %p188 = pnand %p186, %p187
      %p189 = pneg %p188
      // Predicated region
      $region9: #{tpu_custom_call.1} parent=5 // pred_check
        _
      $region10: #{tpu_custom_call.1} parent=5 // pred_check_branch
        %191 = sbr.rel (%p188) target = $region12
      $region11: #{tpu_custom_call.1} parent=5 // pred_region
        %s192 = ssub.s32 %s12, 1
        // Predicated region
        $region13: #{tpu_custom_call.1} parent=11 // pred_check
          %p193 = pneg %p73
        $region14: #{tpu_custom_call.1} parent=11 // pred_check_branch
          %195 = sbr.rel (%p193) target = $region16
        $region15: #{tpu_custom_call.1} parent=11 // pred_region
          _
        $region16: #{tpu_custom_call.1} parent=11 // pred_fallthru
          _
        // Predicated region
        $region17: #{tpu_custom_call.1} parent=11 // pred_check
          %p196 = pneg %p94
        $region18: #{tpu_custom_call.1} parent=11 // pred_check_branch
          %198 = sbr.rel (%p196) target = $region20
        $region19: #{tpu_custom_call.1} parent=11 // pred_region
          _
        $region20: #{tpu_custom_call.1} parent=11 // pred_fallthru
          _
      $region12: #{tpu_custom_call.1} parent=5 // pred_fallthru
        _
      %p199 = scmp.lt.s32.totalorder %s12, 4
      // Predicated region
      $region21: #{tpu_custom_call.1} parent=5 // pred_check
        %p200 = pneg %p199
      $region22: #{tpu_custom_call.1} parent=5 // pred_check_branch
        %202 = sbr.rel (%p200) target = $region24
      $region23: #{tpu_custom_call.1} parent=5 // pred_region
        // Predicated region
        $region25: #{tpu_custom_call.1} parent=23 // pred_check
          %p203 = pneg %p46
        $region26: #{tpu_custom_call.1} parent=23 // pred_check_branch
          %205 = sbr.rel (%p203) target = $region28
        $region27: #{tpu_custom_call.1} parent=23 // pred_region
          %s206 = smul.u32 4, %s20
          %p207 = scmp.lt.s32.totalorder %s19, 1
          %s208 = scalar_select %p207, %s19, 1
          %p209 = scmp.lt.s32.totalorder %s206, 7
          %s210 = scalar_select %p209, %s206, 7
          %s211 = smul.addr %s208, 8
          %s212 = sadd.s32 %s210, %s211
          %s213 = smul.addr %s212, 8
          %s214 = scalar_lea.vmem %s0, %s213
          %s215 = smul.u32 4, %s20
        $region28: #{tpu_custom_call.1} parent=23 // pred_fallthru
          _
      $region24: #{tpu_custom_call.1} parent=5 // pred_fallthru
        _
      %p216 = scmp.le.s32.totalorder 1, %s12
      %p217 = scmp.lt.s32.totalorder %s12, 5
      %p218 = pnand %p216, %p217
      %p219 = pneg %p218
      // Predicated region
      $region29: #{tpu_custom_call.1} parent=5 // pred_check
        _
      $region30: #{tpu_custom_call.1} parent=5 // pred_check_branch
        %221 = sbr.rel (%p218) target = $region32
      $region31: #{tpu_custom_call.1} parent=5 // pred_region
        %s222 = ssub.s32 %s12, 1
        %s223 = smul.u32 4, %s22
        %p224 = scmp.lt.s32.totalorder %s21, 1
        %s225 = scalar_select %p224, %s21, 1
        %p226 = scmp.lt.s32.totalorder %s223, 7
        %s227 = scalar_select %p226, %s223, 7
        %s228 = smul.addr %s225, 8
        %s229 = sadd.s32 %s227, %s228
        %s230 = smul.addr %s229, 8
        %s231 = scalar_lea.vmem %s0, %s230
        %p232 = pneg %p52
        %p233 = pneg %p49
        %p234 = pneg %p73
        %p235 = pneg %p70
        %p236 = pneg %p94
        %p237 = pneg %p91
        %p238 = pneg %p122
        %p239 = pneg %p119
        %s240 = sand.u32 %s109, 1
        %s241 = sand.u32 %s109, 1
        %s242 = smul.addr %s241, 128
        %s243 = scalar_lea.vmem [#allocation2], %s242
        %p244 = pneg %p150
        %p245 = pneg %p147
        %s246 = sand.u32 %s137, 1
        %s247 = sand.u32 %s137, 1
        %s248 = smul.addr %s247, 128
        %s249 = scalar_lea.vmem [#allocation3], %s248
        %p250 = pneg %p178
        %p251 = pneg %p175
        %s252 = sand.u32 %s165, 1
        %s253 = sand.u32 %s165, 1
        %s254 = smul.addr %s253, 128
        %s255 = scalar_lea.vmem [#allocation4], %s254
        %s256 = smul.u32 4, %s22
        %p257 = scmp.lt.s32.totalorder %s21, 1
        %s258 = scalar_select %p257, %s21, 1
        %p259 = scmp.lt.s32.totalorder %s256, 7
        %s260 = scalar_select %p259, %s256, 7
        %s261 = smul.addr %s258, 8
        %s262 = sadd.s32 %s260, %s261
        %s263 = smul.addr %s262, 8
        %s264 = scalar_lea.vmem %s0, %s263
        %s265 = smul.u32 4, %s22
        %s266 = smul.u32 4, %s22
        %s267 = smul.u32 4, %s22
        %s268 = smul.u32 4, %s22
        %v269 = vld [vmem:[%s264] sm:$0xff]
        %v270 = vld [vmem:[%s264 + $0x8] sm:$0xff]
        %v271 = vld [vmem:[%s264 + $0x10] sm:$0xff]
        %v272 = vld [vmem:[%s264 + $0x18] sm:$0xff]
        %v273 = vld [vmem:[%s1] sm:$0xff]
        %v274 = vld [vmem:[%s1 + $0x8] sm:$0xff]
        %v275 = vld [vmem:[%s1 + $0x10] sm:$0xff]
        %v276 = vld [vmem:[%s1 + $0x18] sm:$0xff]
        %v277 = vld [vmem:[%s2] sm:$0x1]
        %v279 = vperm.slane %v277, 0
        %vm281 = vcmask 261120
        %v283 = vsel %vm281, %v269, 0
        %v286 = vsel %vm281, %v270, 0
        %v289 = vsel %vm281, %v271, 0
        %v292 = vsel %vm281, %v272, 0
        %294 = vmatpush.msra.mxu0 0.0
        %295 = vmatpush.msra.mxu0 0.0
        %296 = vmatpush.msra.mxu0 0.0
        %297 = vmatpush.msra.mxu0 0.0
        %298 = vmatpush.msra.mxu0 0.0
        %299 = vmatpush.msra.mxu0 0.0
        %300 = vmatpush.msra.mxu0 0.0
        %301 = vmatpush.msra.mxu0 0.0
        %302 = vmatpush.msra.mxu0 0.0
        %303 = vmatpush.msra.mxu0 0.0
        %304 = vmatpush.msra.mxu0 0.0
        %305 = vmatpush.msra.mxu0 0.0
        %306 = vmatpush.msra.mxu0 %v276
        %307 = vmatpush.msra.mxu0 %v275
        %308 = vmatpush.msra.mxu0 %v274
        %309 = vmatpush.msra.mxu0 %v273
        %310 = vmatmul.f32.gmra.mxu0 %v283
        %v311 = vpop.f32.mrf.mxu0
        %v312 = vadd.f32 %v279, %v311
        %313 = vmatmul.f32.gmra.mxu0 %v286
        %v314 = vpop.f32.mrf.mxu0
        %v315 = vadd.f32 %v279, %v314
        %316 = vmatmul.f32.gmra.mxu0 %v289
        %v317 = vpop.f32.mrf.mxu0
        %v318 = vadd.f32 %v279, %v317
        %319 = vmatmul.f32.gmra.mxu0 %v292
        %v320 = vpop.f32.mrf.mxu0
        %v321 = vadd.f32 %v279, %v320
        %322 = vdwg.mxu0
        %vm323 = vcmask 64512
        %324 = vst.msk [vmem:[%s243] sm:$0xff] %vm323, %v312
        %325 = vst.msk [vmem:[%s243 + $0x8] sm:$0xff] %vm323, %v315
        %326 = vst.msk [vmem:[%s243 + $0x10] sm:$0xff] %vm323, %v318
        %327 = vst.msk [vmem:[%s243 + $0x18] sm:$0xff] %vm323, %v321
        %332 = vrot.lane.b32.xlu0 %v312, 96
        %v333 = vpop.permute.xlu0 %332
        %334 = vrot.lane.b32.xlu0 %v315, 96
        %v335 = vpop.permute.xlu0 %334
        %336 = vrot.lane.b32.xlu0 %v318, 96
        %v337 = vpop.permute.xlu0 %336
        %338 = vrot.lane.b32.xlu0 %v321, 96
        %v339 = vpop.permute.xlu0 %338
        %344 = vst.msk [vmem:[%s249] sm:$0xff] %vm323, %v333
        %345 = vst.msk [vmem:[%s249 + $0x8] sm:$0xff] %vm323, %v335
        %346 = vst.msk [vmem:[%s249 + $0x10] sm:$0xff] %vm323, %v337
        %347 = vst.msk [vmem:[%s249 + $0x18] sm:$0xff] %vm323, %v339
        %348 = vrot.lane.b32.xlu0 %v312, 64
        %v349 = vpop.permute.xlu0 %348
        %350 = vrot.lane.b32.xlu0 %v315, 64
        %v351 = vpop.permute.xlu0 %350
        %352 = vrot.lane.b32.xlu0 %v318, 64
        %v353 = vpop.permute.xlu0 %352
        %354 = vrot.lane.b32.xlu0 %v321, 64
        %v355 = vpop.permute.xlu0 %354
        %360 = vst.msk [vmem:[%s255] sm:$0xff] %vm323, %v349
        %361 = vst.msk [vmem:[%s255 + $0x8] sm:$0xff] %vm323, %v351
        %362 = vst.msk [vmem:[%s255 + $0x10] sm:$0xff] %vm323, %v353
        %363 = vst.msk [vmem:[%s255 + $0x18] sm:$0xff] %vm323, %v355
        %364 = vrot.lane.b32.xlu0 %v312, 120
        %v365 = vpop.permute.xlu0 %364
        %366 = vrot.lane.b32.xlu0 %v315, 120
        %v367 = vpop.permute.xlu0 %366
        %368 = vrot.lane.b32.xlu0 %v318, 120
        %v369 = vpop.permute.xlu0 %368
        %370 = vrot.lane.b32.xlu0 %v321, 120
        %v371 = vpop.permute.xlu0 %370
        %s376 = scalar_lea.vmem %s243, 32 [#allocation2]
        %377 = vst.msk [vmem:[%s376] sm:$0xff] %vm323, %v365
        %378 = vst.msk [vmem:[%s376 + $0x8] sm:$0xff] %vm323, %v367
        %379 = vst.msk [vmem:[%s376 + $0x10] sm:$0xff] %vm323, %v369
        %380 = vst.msk [vmem:[%s376 + $0x18] sm:$0xff] %vm323, %v371
        %381 = vrot.lane.b32.xlu0 %v312, 88
        %v382 = vpop.permute.xlu0 %381
        %383 = vrot.lane.b32.xlu0 %v315, 88
        %v384 = vpop.permute.xlu0 %383
        %385 = vrot.lane.b32.xlu0 %v318, 88
        %v386 = vpop.permute.xlu0 %385
        %387 = vrot.lane.b32.xlu0 %v321, 88
        %v388 = vpop.permute.xlu0 %387
        %s393 = scalar_lea.vmem %s249, 32 [#allocation3]
        %394 = vst.msk [vmem:[%s393] sm:$0xff] %vm323, %v382
        %395 = vst.msk [vmem:[%s393 + $0x8] sm:$0xff] %vm323, %v384
        %396 = vst.msk [vmem:[%s393 + $0x10] sm:$0xff] %vm323, %v386
        %397 = vst.msk [vmem:[%s393 + $0x18] sm:$0xff] %vm323, %v388
        %398 = vrot.lane.b32.xlu0 %v312, 56
        %v399 = vpop.permute.xlu0 %398
        %400 = vrot.lane.b32.xlu0 %v315, 56
        %v401 = vpop.permute.xlu0 %400
        %402 = vrot.lane.b32.xlu0 %v318, 56
        %v403 = vpop.permute.xlu0 %402
        %404 = vrot.lane.b32.xlu0 %v321, 56
        %v405 = vpop.permute.xlu0 %404
        %s410 = scalar_lea.vmem %s255, 32 [#allocation4]
        %411 = vst.msk [vmem:[%s410] sm:$0xff] %vm323, %v399
        %412 = vst.msk [vmem:[%s410 + $0x8] sm:$0xff] %vm323, %v401
        %413 = vst.msk [vmem:[%s410 + $0x10] sm:$0xff] %vm323, %v403
        %414 = vst.msk [vmem:[%s410 + $0x18] sm:$0xff] %vm323, %v405
        %415 = vrot.lane.b32.xlu0 %v312, 112
        %v416 = vpop.permute.xlu0 %415
        %417 = vrot.lane.b32.xlu0 %v315, 112
        %v418 = vpop.permute.xlu0 %417
        %419 = vrot.lane.b32.xlu0 %v318, 112
        %v420 = vpop.permute.xlu0 %419
        %421 = vrot.lane.b32.xlu0 %v321, 112
        %v422 = vpop.permute.xlu0 %421
        %s427 = scalar_lea.vmem %s243, 64 [#allocation2]
        %428 = vst.msk [vmem:[%s427] sm:$0xff] %vm323, %v416
        %429 = vst.msk [vmem:[%s427 + $0x8] sm:$0xff] %vm323, %v418
        %430 = vst.msk [vmem:[%s427 + $0x10] sm:$0xff] %vm323, %v420
        %431 = vst.msk [vmem:[%s427 + $0x18] sm:$0xff] %vm323, %v422
        %432 = vrot.lane.b32.xlu0 %v312, 80
        %v433 = vpop.permute.xlu0 %432
        %434 = vrot.lane.b32.xlu0 %v315, 80
        %v435 = vpop.permute.xlu0 %434
        %436 = vrot.lane.b32.xlu0 %v318, 80
        %v437 = vpop.permute.xlu0 %436
        %438 = vrot.lane.b32.xlu0 %v321, 80
        %v439 = vpop.permute.xlu0 %438
        %s444 = scalar_lea.vmem %s249, 64 [#allocation3]
        %445 = vst.msk [vmem:[%s444] sm:$0xff] %vm323, %v433
        %446 = vst.msk [vmem:[%s444 + $0x8] sm:$0xff] %vm323, %v435
        %447 = vst.msk [vmem:[%s444 + $0x10] sm:$0xff] %vm323, %v437
        %448 = vst.msk [vmem:[%s444 + $0x18] sm:$0xff] %vm323, %v439
        %449 = vrot.lane.b32.xlu0 %v312, 48
        %v450 = vpop.permute.xlu0 %449
        %451 = vrot.lane.b32.xlu0 %v315, 48
        %v452 = vpop.permute.xlu0 %451
        %453 = vrot.lane.b32.xlu0 %v318, 48
        %v454 = vpop.permute.xlu0 %453
        %455 = vrot.lane.b32.xlu0 %v321, 48
        %v456 = vpop.permute.xlu0 %455
        %s461 = scalar_lea.vmem %s255, 64 [#allocation4]
        %462 = vst.msk [vmem:[%s461] sm:$0xff] %vm323, %v450
        %463 = vst.msk [vmem:[%s461 + $0x8] sm:$0xff] %vm323, %v452
        %464 = vst.msk [vmem:[%s461 + $0x10] sm:$0xff] %vm323, %v454
        %465 = vst.msk [vmem:[%s461 + $0x18] sm:$0xff] %vm323, %v456
        %466 = vrot.lane.b32.xlu0 %v312, 104
        %v467 = vpop.permute.xlu0 %466
        %468 = vrot.lane.b32.xlu0 %v315, 104
        %v469 = vpop.permute.xlu0 %468
        %470 = vrot.lane.b32.xlu0 %v318, 104
        %v471 = vpop.permute.xlu0 %470
        %472 = vrot.lane.b32.xlu0 %v321, 104
        %v473 = vpop.permute.xlu0 %472
        %s478 = scalar_lea.vmem %s243, 96 [#allocation2]
        %479 = vst.msk [vmem:[%s478] sm:$0xff] %vm323, %v467
        %480 = vst.msk [vmem:[%s478 + $0x8] sm:$0xff] %vm323, %v469
        %481 = vst.msk [vmem:[%s478 + $0x10] sm:$0xff] %vm323, %v471
        %482 = vst.msk [vmem:[%s478 + $0x18] sm:$0xff] %vm323, %v473
        %483 = vrot.lane.b32.xlu0 %v312, 72
        %v484 = vpop.permute.xlu0 %483
        %485 = vrot.lane.b32.xlu0 %v315, 72
        %v486 = vpop.permute.xlu0 %485
        %487 = vrot.lane.b32.xlu0 %v318, 72
        %v488 = vpop.permute.xlu0 %487
        %489 = vrot.lane.b32.xlu0 %v321, 72
        %v490 = vpop.permute.xlu0 %489
        %s495 = scalar_lea.vmem %s249, 96 [#allocation3]
        %496 = vst.msk [vmem:[%s495] sm:$0xff] %vm323, %v484
        %497 = vst.msk [vmem:[%s495 + $0x8] sm:$0xff] %vm323, %v486
        %498 = vst.msk [vmem:[%s495 + $0x10] sm:$0xff] %vm323, %v488
        %499 = vst.msk [vmem:[%s495 + $0x18] sm:$0xff] %vm323, %v490
        %500 = vrot.lane.b32.xlu0 %v312, 40
        %v501 = vpop.permute.xlu0 %500
        %502 = vrot.lane.b32.xlu0 %v315, 40
        %v503 = vpop.permute.xlu0 %502
        %504 = vrot.lane.b32.xlu0 %v318, 40
        %v505 = vpop.permute.xlu0 %504
        %506 = vrot.lane.b32.xlu0 %v321, 40
        %v507 = vpop.permute.xlu0 %506
        %s512 = scalar_lea.vmem %s255, 96 [#allocation4]
        %513 = vst.msk [vmem:[%s512] sm:$0xff] %vm323, %v501
        %514 = vst.msk [vmem:[%s512 + $0x8] sm:$0xff] %vm323, %v503
        %515 = vst.msk [vmem:[%s512 + $0x10] sm:$0xff] %vm323, %v505
        %516 = vst.msk [vmem:[%s512 + $0x18] sm:$0xff] %vm323, %v507
        %s517 = sand.u32 %s109, 1
        %s518 = sand.u32 %s109, 1
        %s519 = smul.addr %s518, 128
        %s520 = scalar_lea.vmem [#allocation2], %s519
        %s521 = sand.u32 %s137, 1
        %s522 = sand.u32 %s137, 1
        %s523 = smul.addr %s522, 128
        %s524 = scalar_lea.vmem [#allocation3], %s523
        %s525 = sand.u32 %s165, 1
        %s526 = sand.u32 %s165, 1
        %s527 = smul.addr %s526, 128
        %s528 = scalar_lea.vmem [#allocation4], %s527
        // Predicated region
        $region33: #{tpu_custom_call.1} parent=31 // pred_check
          %p529 = pneg %p119
        $region34: #{tpu_custom_call.1} parent=31 // pred_check_branch
          %531 = sbr.rel (%p529) target = $region36
        $region35: #{tpu_custom_call.1} parent=31 // pred_region
          %s532 = smul.u32 4, %s22
          %s533 = smul.addr %s21, 32
          %s534 = sadd.s32 %s532, %s533
          %s535 = smul.addr %s534, 8
          %s536 = scalar_lea.vmem %s3, %s535
          // Predicated region
          $region37: #{tpu_custom_call.1} parent=35 // pred_check
            _
          $region38: #{tpu_custom_call.1} parent=35 // pred_check_branch
            %538 = sbr.rel (0) target = $region40
          $region39: #{tpu_custom_call.1} parent=35 // pred_region
            // Predicated region
            $region41: #{tpu_custom_call.1} parent=39 // pred_check
              _
            $region42: #{tpu_custom_call.1} parent=39 // pred_check_branch
              %540 = sbr.rel (0) target = $region44
            $region43: #{tpu_custom_call.1} parent=39 // pred_region
              // Predicated region
              $region56: #{tpu_custom_call.1} parent=43 // pred_check
                _
              $region57: #{tpu_custom_call.1} parent=43 // pred_check_branch
                %586 = sbr.rel (0) target = $region59
              $region58: #{tpu_custom_call.1} parent=43 // pred_region
                loop: start=0, step=1, limit=1
                $region60: #{tpu_custom_call.1} parent=58 // loop_pre_header
                  _
                $region61: #{tpu_custom_call.1} parent=58 // loop_header
                  %s588 = sphi 0, %s592
                  %p589 = scmp.ge.s32.totalorder %s588, 1
                  %s593 = sphi %s520, %s520
                  %s594 = sphi %s536, %s536
                $region62: #{tpu_custom_call.1} parent=58 // loop_header_branch
                  %591 = sbr.rel (%p589) target = $region66
                $region63: #{tpu_custom_call.1} parent=58 // loop_body
                  %v595 = vld [vmem:[%s593] sm:$0xff]
                  %596 = vst [vmem:[%s594] sm:$0xff] %v595
                  %v597 = vld [vmem:[%s593 + $0x8] sm:$0xff]
                  %598 = vst [vmem:[%s594 + $0x8] sm:$0xff] %v597
                  %v599 = vld [vmem:[%s593 + $0x10] sm:$0xff]
                  %600 = vst [vmem:[%s594 + $0x10] sm:$0xff] %v599
                  %v601 = vld [vmem:[%s593 + $0x18] sm:$0xff]
                  %602 = vst [vmem:[%s594 + $0x18] sm:$0xff] %v601
                  %v603 = vld [vmem:[%s593 + $0x20] sm:$0xff]
                  %604 = vst [vmem:[%s594 + $0x40] sm:$0xff] %v603
                  %v605 = vld [vmem:[%s593 + $0x28] sm:$0xff]
                  %606 = vst [vmem:[%s594 + $0x48] sm:$0xff] %v605
                  %v607 = vld [vmem:[%s593 + $0x30] sm:$0xff]
                  %608 = vst [vmem:[%s594 + $0x50] sm:$0xff] %v607
                  %v609 = vld [vmem:[%s593 + $0x38] sm:$0xff]
                  %610 = vst [vmem:[%s594 + $0x58] sm:$0xff] %v609
                  %v611 = vld [vmem:[%s593 + $0x40] sm:$0xff]
                  %612 = vst [vmem:[%s594 + $0x80] sm:$0xff] %v611
                  %v613 = vld [vmem:[%s593 + $0x48] sm:$0xff]
                  %614 = vst [vmem:[%s594 + $0x88] sm:$0xff] %v613
                  %v615 = vld [vmem:[%s593 + $0x50] sm:$0xff]
                  %616 = vst [vmem:[%s594 + $0x90] sm:$0xff] %v615
                  %v617 = vld [vmem:[%s593 + $0x58] sm:$0xff]
                  %618 = vst [vmem:[%s594 + $0x98] sm:$0xff] %v617
                  %v619 = vld [vmem:[%s593 + $0x60] sm:$0xff]
                  %620 = vst [vmem:[%s594 + $0xc0] sm:$0xff] %v619
                  %v621 = vld [vmem:[%s593 + $0x68] sm:$0xff]
                  %622 = vst [vmem:[%s594 + $0xc8] sm:$0xff] %v621
                  %v623 = vld [vmem:[%s593 + $0x70] sm:$0xff]
                  %624 = vst [vmem:[%s594 + $0xd0] sm:$0xff] %v623
                  %v625 = vld [vmem:[%s593 + $0x78] sm:$0xff]
                  %626 = vst [vmem:[%s594 + $0xd8] sm:$0xff] %v625
                $region64: #{tpu_custom_call.1} parent=58 // loop_footer
                  %s592 = sadd.s32 1, %s588
                $region65: #{tpu_custom_call.1} parent=58 // loop_footer_branch
                  %587 = sbr.rel target = $region61
                $region66: #{tpu_custom_call.1} parent=58 // loop_exit
                  _
              $region59: #{tpu_custom_call.1} parent=43 // pred_fallthru
                _
              // Predicated region
              $region67: #{tpu_custom_call.1} parent=43 // pred_check
                _
              $region68: #{tpu_custom_call.1} parent=43 // pred_check_branch
                %628 = sbr.rel target = $region70
              $region69: #{tpu_custom_call.1} parent=43 // pred_region
                _
              $region70: #{tpu_custom_call.1} parent=43 // pred_fallthru
                _
            $region44: #{tpu_custom_call.1} parent=39 // pred_fallthru
              _
            // Predicated region
            $region45: #{tpu_custom_call.1} parent=39 // pred_check
              _
            $region46: #{tpu_custom_call.1} parent=39 // pred_check_branch
              %542 = sbr.rel target = $region48
            $region47: #{tpu_custom_call.1} parent=39 // pred_region
              %s544 = ssub.s32 256, 1
              loop: start=0, step=1, limit=1
              $region49: #{tpu_custom_call.1} parent=47 // loop_pre_header
                _
              $region50: #{tpu_custom_call.1} parent=47 // loop_header
                %s546 = sphi 0, %s550
                %p547 = scmp.ge.s32.totalorder %s546, 1
                %s551 = sphi %s520, %s520
                %s552 = sphi %s536, %s536
              $region51: #{tpu_custom_call.1} parent=47 // loop_header_branch
                %549 = sbr.rel (%p547) target = $region55
              $region52: #{tpu_custom_call.1} parent=47 // loop_body
                %v553 = vld [vmem:[%s551] sm:%s544]
                %554 = vst [vmem:[%s552] sm:%s544] %v553
                %v555 = vld [vmem:[%s551 + $0x8] sm:%s544]
                %556 = vst [vmem:[%s552 + $0x8] sm:%s544] %v555
                %v557 = vld [vmem:[%s551 + $0x10] sm:%s544]
                %558 = vst [vmem:[%s552 + $0x10] sm:%s544] %v557
                %v559 = vld [vmem:[%s551 + $0x18] sm:%s544]
                %560 = vst [vmem:[%s552 + $0x18] sm:%s544] %v559
                %v561 = vld [vmem:[%s551 + $0x20] sm:%s544]
                %562 = vst [vmem:[%s552 + $0x40] sm:%s544] %v561
                %v563 = vld [vmem:[%s551 + $0x28] sm:%s544]
                %564 = vst [vmem:[%s552 + $0x48] sm:%s544] %v563
                %v565 = vld [vmem:[%s551 + $0x30] sm:%s544]
                %566 = vst [vmem:[%s552 + $0x50] sm:%s544] %v565
                %v567 = vld [vmem:[%s551 + $0x38] sm:%s544]
                %568 = vst [vmem:[%s552 + $0x58] sm:%s544] %v567
                %v569 = vld [vmem:[%s551 + $0x40] sm:%s544]
                %570 = vst [vmem:[%s552 + $0x80] sm:%s544] %v569
                %v571 = vld [vmem:[%s551 + $0x48] sm:%s544]
                %572 = vst [vmem:[%s552 + $0x88] sm:%s544] %v571
                %v573 = vld [vmem:[%s551 + $0x50] sm:%s544]
                %574 = vst [vmem:[%s552 + $0x90] sm:%s544] %v573
                %v575 = vld [vmem:[%s551 + $0x58] sm:%s544]
                %576 = vst [vmem:[%s552 + $0x98] sm:%s544] %v575
                %v577 = vld [vmem:[%s551 + $0x60] sm:%s544]
                %578 = vst [vmem:[%s552 + $0xc0] sm:%s544] %v577
                %v579 = vld [vmem:[%s551 + $0x68] sm:%s544]
                %580 = vst [vmem:[%s552 + $0xc8] sm:%s544] %v579
                %v581 = vld [vmem:[%s551 + $0x70] sm:%s544]
                %582 = vst [vmem:[%s552 + $0xd0] sm:%s544] %v581
                %v583 = vld [vmem:[%s551 + $0x78] sm:%s544]
                %584 = vst [vmem:[%s552 + $0xd8] sm:%s544] %v583
              $region53: #{tpu_custom_call.1} parent=47 // loop_footer
                %s550 = sadd.s32 1, %s546
              $region54: #{tpu_custom_call.1} parent=47 // loop_footer_branch
                %545 = sbr.rel target = $region50
              $region55: #{tpu_custom_call.1} parent=47 // loop_exit
                _
            $region48: #{tpu_custom_call.1} parent=39 // pred_fallthru
              _
          $region40: #{tpu_custom_call.1} parent=35 // pred_fallthru
            _
          %629 = vnop
        $region36: #{tpu_custom_call.1} parent=31 // pred_fallthru
          _
        // Predicated region
        $region71: #{tpu_custom_call.1} parent=31 // pred_check
          %p630 = pneg %p147
        $region72: #{tpu_custom_call.1} parent=31 // pred_check_branch
          %632 = sbr.rel (%p630) target = $region74
        $region73: #{tpu_custom_call.1} parent=31 // pred_region
          %s633 = smul.u32 4, %s22
          %s634 = smul.addr %s21, 32
          %s635 = sadd.s32 %s633, %s634
          %s636 = smul.addr %s635, 8
          %s637 = scalar_lea.vmem %s4, %s636
          // Predicated region
          $region75: #{tpu_custom_call.1} parent=73 // pred_check
            _
          $region76: #{tpu_custom_call.1} parent=73 // pred_check_branch
            %639 = sbr.rel (0) target = $region78
          $region77: #{tpu_custom_call.1} parent=73 // pred_region
            // Predicated region
            $region79: #{tpu_custom_call.1} parent=77 // pred_check
              _
            $region80: #{tpu_custom_call.1} parent=77 // pred_check_branch
              %641 = sbr.rel (0) target = $region82
            $region81: #{tpu_custom_call.1} parent=77 // pred_region
              // Predicated region
              $region94: #{tpu_custom_call.1} parent=81 // pred_check
                _
              $region95: #{tpu_custom_call.1} parent=81 // pred_check_branch
                %687 = sbr.rel (0) target = $region97
              $region96: #{tpu_custom_call.1} parent=81 // pred_region
                loop: start=0, step=1, limit=1
                $region98: #{tpu_custom_call.1} parent=96 // loop_pre_header
                  _
                $region99: #{tpu_custom_call.1} parent=96 // loop_header
                  %s689 = sphi 0, %s693
                  %p690 = scmp.ge.s32.totalorder %s689, 1
                  %s694 = sphi %s524, %s524
                  %s695 = sphi %s637, %s637
                $region100: #{tpu_custom_call.1} parent=96 // loop_header_branch
                  %692 = sbr.rel (%p690) target = $region104
                $region101: #{tpu_custom_call.1} parent=96 // loop_body
                  %v696 = vld [vmem:[%s694] sm:$0xff]
                  %697 = vst [vmem:[%s695] sm:$0xff] %v696
                  %v698 = vld [vmem:[%s694 + $0x8] sm:$0xff]
                  %699 = vst [vmem:[%s695 + $0x8] sm:$0xff] %v698
                  %v700 = vld [vmem:[%s694 + $0x10] sm:$0xff]
                  %701 = vst [vmem:[%s695 + $0x10] sm:$0xff] %v700
                  %v702 = vld [vmem:[%s694 + $0x18] sm:$0xff]
                  %703 = vst [vmem:[%s695 + $0x18] sm:$0xff] %v702
                  %v704 = vld [vmem:[%s694 + $0x20] sm:$0xff]
                  %705 = vst [vmem:[%s695 + $0x40] sm:$0xff] %v704
                  %v706 = vld [vmem:[%s694 + $0x28] sm:$0xff]
                  %707 = vst [vmem:[%s695 + $0x48] sm:$0xff] %v706
                  %v708 = vld [vmem:[%s694 + $0x30] sm:$0xff]
                  %709 = vst [vmem:[%s695 + $0x50] sm:$0xff] %v708
                  %v710 = vld [vmem:[%s694 + $0x38] sm:$0xff]
                  %711 = vst [vmem:[%s695 + $0x58] sm:$0xff] %v710
                  %v712 = vld [vmem:[%s694 + $0x40] sm:$0xff]
                  %713 = vst [vmem:[%s695 + $0x80] sm:$0xff] %v712
                  %v714 = vld [vmem:[%s694 + $0x48] sm:$0xff]
                  %715 = vst [vmem:[%s695 + $0x88] sm:$0xff] %v714
                  %v716 = vld [vmem:[%s694 + $0x50] sm:$0xff]
                  %717 = vst [vmem:[%s695 + $0x90] sm:$0xff] %v716
                  %v718 = vld [vmem:[%s694 + $0x58] sm:$0xff]
                  %719 = vst [vmem:[%s695 + $0x98] sm:$0xff] %v718
                  %v720 = vld [vmem:[%s694 + $0x60] sm:$0xff]
                  %721 = vst [vmem:[%s695 + $0xc0] sm:$0xff] %v720
                  %v722 = vld [vmem:[%s694 + $0x68] sm:$0xff]
                  %723 = vst [vmem:[%s695 + $0xc8] sm:$0xff] %v722
                  %v724 = vld [vmem:[%s694 + $0x70] sm:$0xff]
                  %725 = vst [vmem:[%s695 + $0xd0] sm:$0xff] %v724
                  %v726 = vld [vmem:[%s694 + $0x78] sm:$0xff]
                  %727 = vst [vmem:[%s695 + $0xd8] sm:$0xff] %v726
                $region102: #{tpu_custom_call.1} parent=96 // loop_footer
                  %s693 = sadd.s32 1, %s689
                $region103: #{tpu_custom_call.1} parent=96 // loop_footer_branch
                  %688 = sbr.rel target = $region99
                $region104: #{tpu_custom_call.1} parent=96 // loop_exit
                  _
              $region97: #{tpu_custom_call.1} parent=81 // pred_fallthru
                _
              // Predicated region
              $region105: #{tpu_custom_call.1} parent=81 // pred_check
                _
              $region106: #{tpu_custom_call.1} parent=81 // pred_check_branch
                %729 = sbr.rel target = $region108
              $region107: #{tpu_custom_call.1} parent=81 // pred_region
                _
              $region108: #{tpu_custom_call.1} parent=81 // pred_fallthru
                _
            $region82: #{tpu_custom_call.1} parent=77 // pred_fallthru
              _
            // Predicated region
            $region83: #{tpu_custom_call.1} parent=77 // pred_check
              _
            $region84: #{tpu_custom_call.1} parent=77 // pred_check_branch
              %643 = sbr.rel target = $region86
            $region85: #{tpu_custom_call.1} parent=77 // pred_region
              %s645 = ssub.s32 256, 1
              loop: start=0, step=1, limit=1
              $region87: #{tpu_custom_call.1} parent=85 // loop_pre_header
                _
              $region88: #{tpu_custom_call.1} parent=85 // loop_header
                %s647 = sphi 0, %s651
                %p648 = scmp.ge.s32.totalorder %s647, 1
                %s652 = sphi %s524, %s524
                %s653 = sphi %s637, %s637
              $region89: #{tpu_custom_call.1} parent=85 // loop_header_branch
                %650 = sbr.rel (%p648) target = $region93
              $region90: #{tpu_custom_call.1} parent=85 // loop_body
                %v654 = vld [vmem:[%s652] sm:%s645]
                %655 = vst [vmem:[%s653] sm:%s645] %v654
                %v656 = vld [vmem:[%s652 + $0x8] sm:%s645]
                %657 = vst [vmem:[%s653 + $0x8] sm:%s645] %v656
                %v658 = vld [vmem:[%s652 + $0x10] sm:%s645]
                %659 = vst [vmem:[%s653 + $0x10] sm:%s645] %v658
                %v660 = vld [vmem:[%s652 + $0x18] sm:%s645]
                %661 = vst [vmem:[%s653 + $0x18] sm:%s645] %v660
                %v662 = vld [vmem:[%s652 + $0x20] sm:%s645]
                %663 = vst [vmem:[%s653 + $0x40] sm:%s645] %v662
                %v664 = vld [vmem:[%s652 + $0x28] sm:%s645]
                %665 = vst [vmem:[%s653 + $0x48] sm:%s645] %v664
                %v666 = vld [vmem:[%s652 + $0x30] sm:%s645]
                %667 = vst [vmem:[%s653 + $0x50] sm:%s645] %v666
                %v668 = vld [vmem:[%s652 + $0x38] sm:%s645]
                %669 = vst [vmem:[%s653 + $0x58] sm:%s645] %v668
                %v670 = vld [vmem:[%s652 + $0x40] sm:%s645]
                %671 = vst [vmem:[%s653 + $0x80] sm:%s645] %v670
                %v672 = vld [vmem:[%s652 + $0x48] sm:%s645]
                %673 = vst [vmem:[%s653 + $0x88] sm:%s645] %v672
                %v674 = vld [vmem:[%s652 + $0x50] sm:%s645]
                %675 = vst [vmem:[%s653 + $0x90] sm:%s645] %v674
                %v676 = vld [vmem:[%s652 + $0x58] sm:%s645]
                %677 = vst [vmem:[%s653 + $0x98] sm:%s645] %v676
                %v678 = vld [vmem:[%s652 + $0x60] sm:%s645]
                %679 = vst [vmem:[%s653 + $0xc0] sm:%s645] %v678
                %v680 = vld [vmem:[%s652 + $0x68] sm:%s645]
                %681 = vst [vmem:[%s653 + $0xc8] sm:%s645] %v680
                %v682 = vld [vmem:[%s652 + $0x70] sm:%s645]
                %683 = vst [vmem:[%s653 + $0xd0] sm:%s645] %v682
                %v684 = vld [vmem:[%s652 + $0x78] sm:%s645]
                %685 = vst [vmem:[%s653 + $0xd8] sm:%s645] %v684
              $region91: #{tpu_custom_call.1} parent=85 // loop_footer
                %s651 = sadd.s32 1, %s647
              $region92: #{tpu_custom_call.1} parent=85 // loop_footer_branch
                %646 = sbr.rel target = $region88
              $region93: #{tpu_custom_call.1} parent=85 // loop_exit
                _
            $region86: #{tpu_custom_call.1} parent=77 // pred_fallthru
              _
          $region78: #{tpu_custom_call.1} parent=73 // pred_fallthru
            _
          %730 = vnop
        $region74: #{tpu_custom_call.1} parent=31 // pred_fallthru
          _
        // Predicated region
        $region109: #{tpu_custom_call.1} parent=31 // pred_check
          %p731 = pneg %p175
        $region110: #{tpu_custom_call.1} parent=31 // pred_check_branch
          %733 = sbr.rel (%p731) target = $region112
        $region111: #{tpu_custom_call.1} parent=31 // pred_region
          %s734 = smul.u32 4, %s22
          %s735 = smul.addr %s21, 32
          %s736 = sadd.s32 %s734, %s735
          %s737 = smul.addr %s736, 8
          %s738 = scalar_lea.vmem %s5, %s737
          // Predicated region
          $region113: #{tpu_custom_call.1} parent=111 // pred_check
            _
          $region114: #{tpu_custom_call.1} parent=111 // pred_check_branch
            %740 = sbr.rel (0) target = $region116
          $region115: #{tpu_custom_call.1} parent=111 // pred_region
            // Predicated region
            $region117: #{tpu_custom_call.1} parent=115 // pred_check
              _
            $region118: #{tpu_custom_call.1} parent=115 // pred_check_branch
              %742 = sbr.rel (0) target = $region120
            $region119: #{tpu_custom_call.1} parent=115 // pred_region
              // Predicated region
              $region132: #{tpu_custom_call.1} parent=119 // pred_check
                _
              $region133: #{tpu_custom_call.1} parent=119 // pred_check_branch
                %788 = sbr.rel (0) target = $region135
              $region134: #{tpu_custom_call.1} parent=119 // pred_region
                loop: start=0, step=1, limit=1
                $region136: #{tpu_custom_call.1} parent=134 // loop_pre_header
                  _
                $region137: #{tpu_custom_call.1} parent=134 // loop_header
                  %s790 = sphi 0, %s794
                  %p791 = scmp.ge.s32.totalorder %s790, 1
                  %s795 = sphi %s528, %s528
                  %s796 = sphi %s738, %s738
                $region138: #{tpu_custom_call.1} parent=134 // loop_header_branch
                  %793 = sbr.rel (%p791) target = $region142
                $region139: #{tpu_custom_call.1} parent=134 // loop_body
                  %v797 = vld [vmem:[%s795] sm:$0xff]
                  %798 = vst [vmem:[%s796] sm:$0xff] %v797
                  %v799 = vld [vmem:[%s795 + $0x8] sm:$0xff]
                  %800 = vst [vmem:[%s796 + $0x8] sm:$0xff] %v799
                  %v801 = vld [vmem:[%s795 + $0x10] sm:$0xff]
                  %802 = vst [vmem:[%s796 + $0x10] sm:$0xff] %v801
                  %v803 = vld [vmem:[%s795 + $0x18] sm:$0xff]
                  %804 = vst [vmem:[%s796 + $0x18] sm:$0xff] %v803
                  %v805 = vld [vmem:[%s795 + $0x20] sm:$0xff]
                  %806 = vst [vmem:[%s796 + $0x40] sm:$0xff] %v805
                  %v807 = vld [vmem:[%s795 + $0x28] sm:$0xff]
                  %808 = vst [vmem:[%s796 + $0x48] sm:$0xff] %v807
                  %v809 = vld [vmem:[%s795 + $0x30] sm:$0xff]
                  %810 = vst [vmem:[%s796 + $0x50] sm:$0xff] %v809
                  %v811 = vld [vmem:[%s795 + $0x38] sm:$0xff]
                  %812 = vst [vmem:[%s796 + $0x58] sm:$0xff] %v811
                  %v813 = vld [vmem:[%s795 + $0x40] sm:$0xff]
                  %814 = vst [vmem:[%s796 + $0x80] sm:$0xff] %v813
                  %v815 = vld [vmem:[%s795 + $0x48] sm:$0xff]
                  %816 = vst [vmem:[%s796 + $0x88] sm:$0xff] %v815
                  %v817 = vld [vmem:[%s795 + $0x50] sm:$0xff]
                  %818 = vst [vmem:[%s796 + $0x90] sm:$0xff] %v817
                  %v819 = vld [vmem:[%s795 + $0x58] sm:$0xff]
                  %820 = vst [vmem:[%s796 + $0x98] sm:$0xff] %v819
                  %v821 = vld [vmem:[%s795 + $0x60] sm:$0xff]
                  %822 = vst [vmem:[%s796 + $0xc0] sm:$0xff] %v821
                  %v823 = vld [vmem:[%s795 + $0x68] sm:$0xff]
                  %824 = vst [vmem:[%s796 + $0xc8] sm:$0xff] %v823
                  %v825 = vld [vmem:[%s795 + $0x70] sm:$0xff]
                  %826 = vst [vmem:[%s796 + $0xd0] sm:$0xff] %v825
                  %v827 = vld [vmem:[%s795 + $0x78] sm:$0xff]
                  %828 = vst [vmem:[%s796 + $0xd8] sm:$0xff] %v827
                $region140: #{tpu_custom_call.1} parent=134 // loop_footer
                  %s794 = sadd.s32 1, %s790
                $region141: #{tpu_custom_call.1} parent=134 // loop_footer_branch
                  %789 = sbr.rel target = $region137
                $region142: #{tpu_custom_call.1} parent=134 // loop_exit
                  _
              $region135: #{tpu_custom_call.1} parent=119 // pred_fallthru
                _
              // Predicated region
              $region143: #{tpu_custom_call.1} parent=119 // pred_check
                _
              $region144: #{tpu_custom_call.1} parent=119 // pred_check_branch
                %830 = sbr.rel target = $region146
              $region145: #{tpu_custom_call.1} parent=119 // pred_region
                _
              $region146: #{tpu_custom_call.1} parent=119 // pred_fallthru
                _
            $region120: #{tpu_custom_call.1} parent=115 // pred_fallthru
              _
            // Predicated region
            $region121: #{tpu_custom_call.1} parent=115 // pred_check
              _
            $region122: #{tpu_custom_call.1} parent=115 // pred_check_branch
              %744 = sbr.rel target = $region124
            $region123: #{tpu_custom_call.1} parent=115 // pred_region
              %s746 = ssub.s32 256, 1
              loop: start=0, step=1, limit=1
              $region125: #{tpu_custom_call.1} parent=123 // loop_pre_header
                _
              $region126: #{tpu_custom_call.1} parent=123 // loop_header
                %s748 = sphi 0, %s752
                %p749 = scmp.ge.s32.totalorder %s748, 1
                %s753 = sphi %s528, %s528
                %s754 = sphi %s738, %s738
              $region127: #{tpu_custom_call.1} parent=123 // loop_header_branch
                %751 = sbr.rel (%p749) target = $region131
              $region128: #{tpu_custom_call.1} parent=123 // loop_body
                %v755 = vld [vmem:[%s753] sm:%s746]
                %756 = vst [vmem:[%s754] sm:%s746] %v755
                %v757 = vld [vmem:[%s753 + $0x8] sm:%s746]
                %758 = vst [vmem:[%s754 + $0x8] sm:%s746] %v757
                %v759 = vld [vmem:[%s753 + $0x10] sm:%s746]
                %760 = vst [vmem:[%s754 + $0x10] sm:%s746] %v759
                %v761 = vld [vmem:[%s753 + $0x18] sm:%s746]
                %762 = vst [vmem:[%s754 + $0x18] sm:%s746] %v761
                %v763 = vld [vmem:[%s753 + $0x20] sm:%s746]
                %764 = vst [vmem:[%s754 + $0x40] sm:%s746] %v763
                %v765 = vld [vmem:[%s753 + $0x28] sm:%s746]
                %766 = vst [vmem:[%s754 + $0x48] sm:%s746] %v765
                %v767 = vld [vmem:[%s753 + $0x30] sm:%s746]
                %768 = vst [vmem:[%s754 + $0x50] sm:%s746] %v767
                %v769 = vld [vmem:[%s753 + $0x38] sm:%s746]
                %770 = vst [vmem:[%s754 + $0x58] sm:%s746] %v769
                %v771 = vld [vmem:[%s753 + $0x40] sm:%s746]
                %772 = vst [vmem:[%s754 + $0x80] sm:%s746] %v771
                %v773 = vld [vmem:[%s753 + $0x48] sm:%s746]
                %774 = vst [vmem:[%s754 + $0x88] sm:%s746] %v773
                %v775 = vld [vmem:[%s753 + $0x50] sm:%s746]
                %776 = vst [vmem:[%s754 + $0x90] sm:%s746] %v775
                %v777 = vld [vmem:[%s753 + $0x58] sm:%s746]
                %778 = vst [vmem:[%s754 + $0x98] sm:%s746] %v777
                %v779 = vld [vmem:[%s753 + $0x60] sm:%s746]
                %780 = vst [vmem:[%s754 + $0xc0] sm:%s746] %v779
                %v781 = vld [vmem:[%s753 + $0x68] sm:%s746]
                %782 = vst [vmem:[%s754 + $0xc8] sm:%s746] %v781
                %v783 = vld [vmem:[%s753 + $0x70] sm:%s746]
                %784 = vst [vmem:[%s754 + $0xd0] sm:%s746] %v783
                %v785 = vld [vmem:[%s753 + $0x78] sm:%s746]
                %786 = vst [vmem:[%s754 + $0xd8] sm:%s746] %v785
              $region129: #{tpu_custom_call.1} parent=123 // loop_footer
                %s752 = sadd.s32 1, %s748
              $region130: #{tpu_custom_call.1} parent=123 // loop_footer_branch
                %747 = sbr.rel target = $region126
              $region131: #{tpu_custom_call.1} parent=123 // loop_exit
                _
            $region124: #{tpu_custom_call.1} parent=115 // pred_fallthru
              _
          $region116: #{tpu_custom_call.1} parent=111 // pred_fallthru
            _
          %831 = vnop
        $region112: #{tpu_custom_call.1} parent=31 // pred_fallthru
          _
      $region32: #{tpu_custom_call.1} parent=5 // pred_fallthru
        _
      %p832 = scmp.le.s32.totalorder 2, %s12
      // Predicated region
      $region147: #{tpu_custom_call.1} parent=5 // pred_check
        %p833 = pneg %p832
      $region148: #{tpu_custom_call.1} parent=5 // pred_check_branch
        %835 = sbr.rel (%p833) target = $region150
      $region149: #{tpu_custom_call.1} parent=5 // pred_region
        %s836 = ssub.s32 %s12, 2
        // Predicated region
        $region151: #{tpu_custom_call.1} parent=149 // pred_check
          %p837 = pneg %p125
        $region152: #{tpu_custom_call.1} parent=149 // pred_check_branch
          %839 = sbr.rel (%p837) target = $region154
        $region153: #{tpu_custom_call.1} parent=149 // pred_region
          %s840 = sand.u32 %s110, 1
          %s841 = sand.u32 %s110, 1
          %s842 = smul.addr %s841, 128
          %s843 = scalar_lea.vmem [#allocation2], %s842
        $region154: #{tpu_custom_call.1} parent=149 // pred_fallthru
          _
        // Predicated region
        $region155: #{tpu_custom_call.1} parent=149 // pred_check
          %p844 = pneg %p153
        $region156: #{tpu_custom_call.1} parent=149 // pred_check_branch
          %846 = sbr.rel (%p844) target = $region158
        $region157: #{tpu_custom_call.1} parent=149 // pred_region
          %s847 = sand.u32 %s138, 1
          %s848 = sand.u32 %s138, 1
          %s849 = smul.addr %s848, 128
          %s850 = scalar_lea.vmem [#allocation3], %s849
        $region158: #{tpu_custom_call.1} parent=149 // pred_fallthru
          _
        // Predicated region
        $region159: #{tpu_custom_call.1} parent=149 // pred_check
          %p851 = pneg %p181
        $region160: #{tpu_custom_call.1} parent=149 // pred_check_branch
          %853 = sbr.rel (%p851) target = $region162
        $region161: #{tpu_custom_call.1} parent=149 // pred_region
          %s854 = sand.u32 %s166, 1
          %s855 = sand.u32 %s166, 1
          %s856 = smul.addr %s855, 128
          %s857 = scalar_lea.vmem [#allocation4], %s856
        $region162: #{tpu_custom_call.1} parent=149 // pred_fallthru
          _
      $region150: #{tpu_custom_call.1} parent=5 // pred_fallthru
        _
    $region6: #{tpu_custom_call.1} parent=1 // loop_footer
      %s16 = sadd.s32 1, %s12
    $region7: #{tpu_custom_call.1} parent=1 // loop_footer_branch
      %11 = sbr.rel target = $region3
    $region8: #{tpu_custom_call.1} parent=1 // loop_exit
      _

</llo_original>
